<compile_context>
chip_gen: v7x
topology: tpu7x:2x2x1
jax: 0.10.0
libtpu: 0.0.40
codegen_flags: <defaults>
</compile_context>

<pallas_src>
import math

import jax
import jax.numpy as jnp
from jax.experimental import pallas as pl
from jax.experimental.pallas import tpu as pltpu

_LANE = 128


def _round_up(n: int, m: int) -> int:
    return ((n + m - 1) // m) * m


def _lanes(n: int) -> int:
    return _round_up(max(int(n), 1), _LANE)


def _survdl_kernel(x_ref, w1_ref, b1_ref, w2_ref, b2_ref, w3_ref, b3_ref, o_ref):
    """One batch tile of SurvDl. Weights are grid-resident (constant maps)."""
    x = x_ref[...]
    # layer 1: Linear(d_in, h) + ReLU   (MXU)
    h1 = jnp.dot(x, w1_ref[...], preferred_element_type=jnp.float32)
    h1 = jnp.maximum(h1 + b1_ref[...], 0.0)
    # layer 2: Linear(h, d_out) + ReLU  (MXU)
    h2 = jnp.dot(h1, w2_ref[...], preferred_element_type=jnp.float32)
    h2 = jnp.maximum(h2 + b2_ref[...], 0.0)
    # layer 3: Linear(d_out, 1) + Sigmoid, lane-dense.  Contracting h2's
    # feature dim against the (1, d_out) weight row yields a (1, tile) result,
    # so the output block stays lane-major (dense stores, tiny VMEM).
    z = jnp.einsum("od,td->ot", w3_ref[...], h2,
                   preferred_element_type=jnp.float32)
    o_ref[...] = jax.nn.sigmoid(z + b3_ref[0, 0]).astype(o_ref.dtype)


def _max_batch_tile(d_in, h, d_out, vmem_budget_bytes):
    """Largest row tile whose per-step VMEM footprint fits the budget.

    VMEM blocks and f32 intermediates live in (8,128)-tiled memory, so every
    feature dim is lane-padded to 128 for *accounting* even though the arrays
    themselves are unpadded (HBM traffic stays d_in*4 bytes/row)."""
    bytes_per_row = 4 * (
        2 * _lanes(d_in)     # x block, double-buffered by the pipeline
        + _lanes(h)          # h1 intermediate (materialized per tile)
        + _lanes(d_out)      # h2 intermediate
        + 8                  # lane-dense z / output block + slack, amortized
    )
    resident = 4 * (
        _round_up(d_in, 8) * _lanes(h)           # w1
        + _round_up(h, 8) * _lanes(d_out)        # w2
        + 8 * (_lanes(h) + 2 * _lanes(d_out))    # b1, b2, w3 row
    ) + (2 << 20)                                # compiler scratch headroom
    budget = max(vmem_budget_bytes - resident, _LANE * bytes_per_row)
    tile = budget // bytes_per_row
    tile = max(_LANE, (tile // _LANE) * _LANE)
    return int(min(tile, 8192))


def survdl_forward(x, params, *, batch_tile=None,
                   vmem_budget_bytes=20 * 1024 * 1024):
    """Fused forward pass of SurvDl.

    x: (B, d_in) float32
    params: dict with w1 (d_in,h), b1 (1,h), w2 (h,d_out), b2 (1,d_out),
            w3 (d_out,1), b3 (1,1)   (weights stored as (in, out))
    returns: (B, 1) float32
    """
    w1, b1, w2, b2, w3, b3 = (params[k] for k in ("w1", "b1", "w2", "b2", "w3", "b3"))
    B, d_in = x.shape
    h = w1.shape[1]
    d_out = w2.shape[1]

    # Tiny reshapes only — no weight padding, no pass over x.
    b1r = jnp.reshape(b1, (1, h))
    b2r = jnp.reshape(b2, (1, d_out))
    w3row = jnp.reshape(w3, (1, d_out))
    b3s = jnp.reshape(b3, (1, 1))

    # ---- choose the batch tile ---------------------------------------------
    max_tile = _max_batch_tile(d_in, h, d_out, vmem_budget_bytes)
    if batch_tile is None:
        if B <= 1024:
            batch_tile = B                       # one full block; tiny problem
        else:
            # >=4 grid steps (pipelining + megacore), capped by the VMEM budget.
            batch_tile = min(max_tile, _round_up(-(-B // 4), _LANE))
            batch_tile = max(_LANE, batch_tile)
    else:
        batch_tile = int(batch_tile)
        if batch_tile >= B:
            batch_tile = B                       # full-array block is always legal
        else:
            batch_tile = max(_LANE, (batch_tile // _LANE) * _LANE)

    grid = (pl.cdiv(B, batch_tile),)

    cost = pl.CostEstimate(
        flops=2 * B * (d_in * h + h * d_out + d_out),
        transcendentals=B,                                   # one sigmoid / row
        bytes_accessed=4 * (B * d_in + B + d_in * h + h * d_out + h + 2 * d_out + 1),
    )

    out = pl.pallas_call(
        _survdl_kernel,
        out_shape=jax.ShapeDtypeStruct((1, B), jnp.float32),
        grid=grid,
        in_specs=[
            pl.BlockSpec((batch_tile, d_in), lambda i: (i, 0)),   # streamed x
            pl.BlockSpec((d_in, h), lambda i: (0, 0)),            # w1 (resident)
            pl.BlockSpec((1, h), lambda i: (0, 0)),               # b1
            pl.BlockSpec((h, d_out), lambda i: (0, 0)),           # w2
            pl.BlockSpec((1, d_out), lambda i: (0, 0)),           # b2
            pl.BlockSpec((1, d_out), lambda i: (0, 0)),           # w3 row
            pl.BlockSpec(memory_space=pltpu.MemorySpace.SMEM),    # b3 scalar
        ],
        out_specs=pl.BlockSpec((1, batch_tile), lambda i: (0, i)),
        compiler_params=pltpu.CompilerParams(
            dimension_semantics=("parallel",),
            vmem_limit_bytes=32 * 1024 * 1024,   # legal on v5e/v6e/v7x alike
        ),
        cost_estimate=cost,
    )(x, w1, b1r, w2, b2r, w3row, b3s)

    return jnp.reshape(out, (B, 1))


def init_survdl_params(key, d_in, h, d_out):
    """Deterministic init mirroring the PyTorch module:
    - Linear weights: xavier_uniform_ (gain=1)
    - Linear biases: PyTorch default uniform(-1/sqrt(fan_in), 1/sqrt(fan_in))
    Weights stored transposed as (in_features, out_features)."""
    ks = jax.random.split(key, 6)

    def xavier(k, fan_in, fan_out):
        bound = math.sqrt(6.0 / (fan_in + fan_out))
        w = jax.random.uniform(k, (fan_out, fan_in), jnp.float32, -bound, bound)
        return w.T

    def bias(k, fan_in, fan_out):
        bound = 1.0 / math.sqrt(fan_in)
        return jax.random.uniform(k, (1, fan_out), jnp.float32, -bound, bound)

    return {
        "w1": xavier(ks[0], d_in, h),
        "b1": bias(ks[1], d_in, h),
        "w2": xavier(ks[2], h, d_out),
        "b2": bias(ks[3], h, d_out),
        "w3": xavier(ks[4], d_out, 1),
        "b3": bias(ks[5], d_out, 1),
    }


def _reference_forward(x, p):
    hp = jax.lax.Precision.HIGHEST
    h1 = jnp.maximum(jnp.dot(x, p["w1"], precision=hp) + p["b1"], 0.0)
    h2 = jnp.maximum(jnp.dot(h1, p["w2"], precision=hp) + p["b2"], 0.0)
    return jax.nn.sigmoid(jnp.dot(h2, p["w3"], precision=hp) + p["b3"])


if __name__ == "__main__":
    key = jax.random.PRNGKey(0)
    k_x, k_p, k_x2 = jax.random.split(key, 3)

    d_in, h, d_out = 32, 32, 16   # num_time_units is unused in forward()
    params = init_survdl_params(k_p, d_in, h, d_out)

    # Small single-tile case.
    B1 = 8
    x1 = jax.random.normal(k_x, (B1, d_in), jnp.float32)
    out1 = jax.block_until_ready(survdl_forward(x1, params))
    ref1 = _reference_forward(x1, params)
    assert out1.shape == (B1, 1)
    assert jnp.allclose(out1, ref1, atol=1e-4, rtol=1e-4), "mismatch (single tile)"

    # Multi-tile case with a partial last block (exercises the streamed grid
    # and Pallas masking of the ragged final tile).
    B2 = 300
    x2 = jax.random.normal(k_x2, (B2, d_in), jnp.float32)
    out2 = jax.block_until_ready(survdl_forward(x2, params, batch_tile=128))
    ref2 = _reference_forward(x2, params)
    assert out2.shape == (B2, 1)
    assert jnp.allclose(out2, ref2, atol=1e-4, rtol=1e-4), "mismatch (multi tile)"

    print("KERNEL_OK")
</pallas_src>

<mosaic_0001>
module attributes {stable_mosaic.version = 11 : i64} {
  func.func @_survdl_kernel(%arg0: i32, %arg1: memref<8x32xf32, #tpu.memory_space<vmem>>, %arg2: memref<32x32xf32, #tpu.memory_space<vmem>>, %arg3: memref<1x32xf32, #tpu.memory_space<vmem>>, %arg4: memref<32x16xf32, #tpu.memory_space<vmem>>, %arg5: memref<1x16xf32, #tpu.memory_space<vmem>>, %arg6: memref<1x16xf32, #tpu.memory_space<vmem>>, %arg7: memref<1x1xf32, #tpu.memory_space<smem>>, %arg8: memref<1x8xf32, #tpu.memory_space<vmem>>) attributes {dimension_semantics = [#tpu.dimension_semantics<parallel>], iteration_bounds = array<i64: 1>, scalar_prefetch = 0 : i64, scratch_operands = 0 : i64, tpu.core_type = #tpu.core_type<tc>, window_params = [{transform_indices = @transform_0, window_bounds = array<i64: 8, 32>}, {pipeline_mode = #tpu.pipeline_mode<synchronous>, transform_indices = @transform_1, window_bounds = array<i64: 32, 32>}, {pipeline_mode = #tpu.pipeline_mode<synchronous>, transform_indices = @transform_2, window_bounds = array<i64: 1, 32>}, {pipeline_mode = #tpu.pipeline_mode<synchronous>, transform_indices = @transform_3, window_bounds = array<i64: 32, 16>}, {pipeline_mode = #tpu.pipeline_mode<synchronous>, transform_indices = @transform_4, window_bounds = array<i64: 1, 16>}, {pipeline_mode = #tpu.pipeline_mode<synchronous>, transform_indices = @transform_5, window_bounds = array<i64: 1, 16>}, {transform_indices = @transform_6, window_bounds = array<i64: 1, 1>}, {transform_indices = @transform_7, window_bounds = array<i64: 1, 8>}]} {
    %c0 = arith.constant 0 : index
    %c0_0 = arith.constant 0 : index
    %0 = vector.load %arg1[%c0, %c0_0] : memref<8x32xf32, #tpu.memory_space<vmem>>, vector<8x32xf32>
    %c0_1 = arith.constant 0 : index
    %c0_2 = arith.constant 0 : index
    %1 = vector.load %arg2[%c0_1, %c0_2] : memref<32x32xf32, #tpu.memory_space<vmem>>, vector<32x32xf32>
    %cst = arith.constant dense<0.000000e+00> : vector<8x32xf32>
    %2 = tpu.matmul %0, %1, %cst {dimension_numbers = #tpu.dot_dimension_numbers<[1], [0], [0], [1], [0, 0, 1, 1], [], []>} : vector<8x32xf32>, vector<32x32xf32>, vector<8x32xf32> -> vector<8x32xf32>
    %c0_3 = arith.constant 0 : index
    %c0_4 = arith.constant 0 : index
    %3 = vector.load %arg3[%c0_3, %c0_4] : memref<1x32xf32, #tpu.memory_space<vmem>>, vector<1x32xf32>
    %4 = vector.broadcast %3 : vector<1x32xf32> to vector<8x32xf32>
    %5 = arith.addf %2, %4 : vector<8x32xf32>
    %cst_5 = arith.constant 0.000000e+00 : f32
    %6 = vector.broadcast %cst_5 : f32 to vector<8x32xf32>
    %7 = arith.maximumf %5, %6 : vector<8x32xf32>
    %c0_6 = arith.constant 0 : index
    %c0_7 = arith.constant 0 : index
    %8 = vector.load %arg4[%c0_6, %c0_7] : memref<32x16xf32, #tpu.memory_space<vmem>>, vector<32x16xf32>
    %cst_8 = arith.constant dense<0.000000e+00> : vector<8x16xf32>
    %9 = tpu.matmul %7, %8, %cst_8 {dimension_numbers = #tpu.dot_dimension_numbers<[1], [0], [0], [1], [0, 0, 1, 1], [], []>} : vector<8x32xf32>, vector<32x16xf32>, vector<8x16xf32> -> vector<8x16xf32>
    %c0_9 = arith.constant 0 : index
    %c0_10 = arith.constant 0 : index
    %10 = vector.load %arg5[%c0_9, %c0_10] : memref<1x16xf32, #tpu.memory_space<vmem>>, vector<1x16xf32>
    %11 = vector.broadcast %10 : vector<1x16xf32> to vector<8x16xf32>
    %12 = arith.addf %9, %11 : vector<8x16xf32>
    %cst_11 = arith.constant 0.000000e+00 : f32
    %13 = vector.broadcast %cst_11 : f32 to vector<8x16xf32>
    %14 = arith.maximumf %12, %13 : vector<8x16xf32>
    %c0_12 = arith.constant 0 : index
    %c0_13 = arith.constant 0 : index
    %15 = vector.load %arg6[%c0_12, %c0_13] : memref<1x16xf32, #tpu.memory_space<vmem>>, vector<1x16xf32>
    "tpu.trace_start"() <{level = 10 : i32, message = "od,td->ot"}> : () -> ()
    %cst_14 = arith.constant dense<0.000000e+00> : vector<1x8xf32>
    %16 = tpu.matmul %15, %14, %cst_14 {dimension_numbers = #tpu.dot_dimension_numbers<[1], [1], [0], [0], [0, 0, 1, 0], [], []>} : vector<1x16xf32>, vector<8x16xf32>, vector<1x8xf32> -> vector<1x8xf32>
    "tpu.trace_stop"() : () -> ()
    %c0_15 = arith.constant 0 : index
    %c0_16 = arith.constant 0 : index
    %17 = memref.load %arg7[%c0_15, %c0_16] : memref<1x1xf32, #tpu.memory_space<smem>>
    %18 = vector.broadcast %17 : f32 to vector<1x8xf32>
    %19 = arith.addf %16, %18 : vector<1x8xf32>
    %20 = arith.negf %19 : vector<1x8xf32>
    %21 = math.exp %20 : vector<1x8xf32>
    %cst_17 = arith.constant 1.000000e+00 : f32
    %22 = vector.broadcast %cst_17 : f32 to vector<1x8xf32>
    %23 = arith.addf %22, %21 : vector<1x8xf32>
    %24 = arith.divf %22, %23 : vector<1x8xf32>
    %c0_18 = arith.constant 0 : index
    %c0_19 = arith.constant 0 : index
    %25 = vector.load %arg8[%c0_18, %c0_19] : memref<1x8xf32, #tpu.memory_space<vmem>>, vector<1x8xf32>
    tpu.vector_store %arg8[%c0_18, %c0_19], %24 {strides = array<i32>} : memref<1x8xf32, #tpu.memory_space<vmem>>, vector<1x8xf32>,
    return
  }
  func.func @transform_0(%arg0: i32) -> (i32, i32) {
    %c0_i32 = arith.constant 0 : i32
    %c0_i32_0 = arith.constant 0 : i32
    return %arg0, %c0_i32 : i32, i32
  }
  func.func @transform_1(%arg0: i32) -> (i32, i32) {
    %c0_i32 = arith.constant 0 : i32
    %c0_i32_0 = arith.constant 0 : i32
    %c0_i32_1 = arith.constant 0 : i32
    return %c0_i32, %c0_i32_0 : i32, i32
  }
  func.func @transform_2(%arg0: i32) -> (i32, i32) {
    %c0_i32 = arith.constant 0 : i32
    %c0_i32_0 = arith.constant 0 : i32
    %c0_i32_1 = arith.constant 0 : i32
    return %c0_i32, %c0_i32_0 : i32, i32
  }
  func.func @transform_3(%arg0: i32) -> (i32, i32) {
    %c0_i32 = arith.constant 0 : i32
    %c0_i32_0 = arith.constant 0 : i32
    %c0_i32_1 = arith.constant 0 : i32
    return %c0_i32, %c0_i32_0 : i32, i32
  }
  func.func @transform_4(%arg0: i32) -> (i32, i32) {
    %c0_i32 = arith.constant 0 : i32
    %c0_i32_0 = arith.constant 0 : i32
    %c0_i32_1 = arith.constant 0 : i32
    return %c0_i32, %c0_i32_0 : i32, i32
  }
  func.func @transform_5(%arg0: i32) -> (i32, i32) {
    %c0_i32 = arith.constant 0 : i32
    %c0_i32_0 = arith.constant 0 : i32
    %c0_i32_1 = arith.constant 0 : i32
    return %c0_i32, %c0_i32_0 : i32, i32
  }
  func.func @transform_6(%arg0: i32) -> (i32, i32) {
    %c0_i32 = arith.constant 0 : i32
    %c0_i32_0 = arith.constant 0 : i32
    %c0_i32_1 = arith.constant 0 : i32
    return %c0_i32, %c0_i32_0 : i32, i32
  }
  func.func @transform_7(%arg0: i32) -> (i32, i32) {
    %c0_i32 = arith.constant 0 : i32
    %c0_i32_0 = arith.constant 0 : i32
    return %c0_i32, %arg0 : i32, i32
  }
}

</mosaic_0001>

<llo_original>
// kernel: tpu_custom_call.1
$region0: #{tpu_custom_call.1}
  #allocation0 [shape = 'u32[]', space=smem, size = 0x4, offset = 0x4, fixed_abs, tag = 'smem constant byte address 0x4 - core index']
  #allocation1 [shape = 'u32[144,128]{1,0:T(1,128)}', space=vmem, size = 0x12000, scoped, tag = 'internal scratch']
  #allocation2 [shape = 'f32[1,1]{1,0:T(1,128)S(6)}', space=smem, size = 0x200, scoped, tag = 'scoped memory for tpu_custom_call.1']
  %s0 = inlined_call_operand.vmem [shape: f32[8,32], index: 0, kind: input, shape index: {}]
  %s1 = inlined_call_operand.vmem [shape: f32[32,32], index: 1, kind: input, shape index: {}]
  %s2 = inlined_call_operand.vmem [shape: f32[1,32], index: 2, kind: input, shape index: {}]
  %s3 = inlined_call_operand.vmem [shape: f32[32,16], index: 3, kind: input, shape index: {}]
  %s4 = inlined_call_operand.vmem [shape: f32[1,16], index: 4, kind: input, shape index: {}]
  %s5 = inlined_call_operand.vmem [shape: f32[1,16], index: 5, kind: input, shape index: {}]
  %s6 = inlined_call_operand.<no memory space> [shape: f32[1,1], index: 6, kind: input, shape index: {}]
  %s7 = inlined_call_operand.hbm [shape: f32[1,8], index: 7, kind: output, shape index: {}]
  %s8 = sld [smem:[#allocation0]]
  $region38: #{tpu_custom_call.1} parent=0
    _
  %s10 = ssub.s32 1, %s8
  %s11 = scalar_select 0, %s10, %s8
  %12 = sst [smem:[#allocation2]] %s6
  $region1: #{tpu_custom_call.1} parent=0
    #allocation3 [shape = 'u8[512]{0}', space=vmem, size = 0x400, scoped, tag = 'output window, operand 0, single buffered']
    #allocation4 [shape = 's32[1]{0}', space=sflag, size = 0x4, scoped, tag = 'scoped memory for tpu_custom_call.1']
    %13 = vsyncpa [#allocation4], 0
    // Predicated region
    $region2: #{tpu_custom_call.1} parent=1 // pred_check
      _
    $region3: #{tpu_custom_call.1} parent=1 // pred_check_branch
      %15 = sbr.rel (0) target = $region5
    $region4: #{tpu_custom_call.1} parent=1 // pred_region
      _
    $region5: #{tpu_custom_call.1} parent=1 // pred_fallthru
      _
    // Predicated region
    $region6: #{tpu_custom_call.1} parent=1 // pred_check
      _
    $region7: #{tpu_custom_call.1} parent=1 // pred_check_branch
      %17 = sbr.rel (0) target = $region9
    $region8: #{tpu_custom_call.1} parent=1 // pred_region
      _
    $region9: #{tpu_custom_call.1} parent=1 // pred_fallthru
      _
    // Predicated region
    $region10: #{tpu_custom_call.1} parent=1 // pred_check
      _
    $region11: #{tpu_custom_call.1} parent=1 // pred_check_branch
      %19 = sbr.rel (0) target = $region13
    $region12: #{tpu_custom_call.1} parent=1 // pred_region
      _
    $region13: #{tpu_custom_call.1} parent=1 // pred_fallthru
      _
    // Predicated region
    $region14: #{tpu_custom_call.1} parent=1 // pred_check
      _
    $region15: #{tpu_custom_call.1} parent=1 // pred_check_branch
      %21 = sbr.rel (0) target = $region17
    $region16: #{tpu_custom_call.1} parent=1 // pred_region
      _
    $region17: #{tpu_custom_call.1} parent=1 // pred_fallthru
      _
    // Predicated region
    $region18: #{tpu_custom_call.1} parent=1 // pred_check
      _
    $region19: #{tpu_custom_call.1} parent=1 // pred_check_branch
      %23 = sbr.rel (0) target = $region21
    $region20: #{tpu_custom_call.1} parent=1 // pred_region
      _
    $region21: #{tpu_custom_call.1} parent=1 // pred_fallthru
      _
    // Predicated region
    $region22: #{tpu_custom_call.1} parent=1 // pred_check
      _
    $region23: #{tpu_custom_call.1} parent=1 // pred_check_branch
      %25 = sbr.rel (0) target = $region25
    $region24: #{tpu_custom_call.1} parent=1 // pred_region
      _
    $region25: #{tpu_custom_call.1} parent=1 // pred_fallthru
      _
    // Predicated region
    $region26: #{tpu_custom_call.1} parent=1 // pred_check
      _
    $region27: #{tpu_custom_call.1} parent=1 // pred_check_branch
      %27 = sbr.rel (0) target = $region29
    $region28: #{tpu_custom_call.1} parent=1 // pred_region
      _
    $region29: #{tpu_custom_call.1} parent=1 // pred_fallthru
      _
    %v28 = vld [vmem:[%s0] sm:$0xff]
    %v29 = vld [vmem:[%s1] sm:$0xff]
    %v30 = vld [vmem:[%s1 + $0x8] sm:$0xff]
    %v31 = vld [vmem:[%s1 + $0x10] sm:$0xff]
    %v32 = vld [vmem:[%s1 + $0x18] sm:$0xff]
    %v33 = vld [vmem:[%s2] sm:$0x1]
    %v35 = vlaneseq
    %v36 = vshrl.u32 %v35, 7
    %v37 = vsub.s32 0, %v36
    %v38 = vrot.slane %v33, %v37
    %vm40 = vcmask 261120
    %v42 = vsel %vm40, %v28, 0
    %44 = vmatprep.subr.mxu0 0.0
    %45 = vmatpush1.msra.mxu0 %v29
    %46 = vmatprep.subr.mxu0 0.0
    %47 = vmatpush1.msra.mxu0 %v30
    %48 = vmatprep.subr.mxu0 0.0
    %49 = vmatpush1.msra.mxu0 %v31
    %50 = vmatprep.subr.mxu0 0.0
    %51 = vmatpush1.msra.mxu0 %v32
    %52 = vmatprep.subr.mxu0 0.0
    %53 = vmatpush1.msra.mxu0 0.0
    %54 = vmatprep.subr.mxu0 0.0
    %55 = vmatpush1.msra.mxu0 0.0
    %56 = vmatprep.subr.mxu0 0.0
    %57 = vmatpush1.msra.mxu0 0.0
    %58 = vmatprep.subr.mxu0 0.0
    %59 = vmatpush1.msra.mxu0 0.0
    %60 = vmatprep.subr.mxu0 0.0
    %61 = vmatpush1.msra.mxu0 0.0
    %62 = vmatprep.subr.mxu0 0.0
    %63 = vmatpush1.msra.mxu0 0.0
    %64 = vmatprep.subr.mxu0 0.0
    %65 = vmatpush1.msra.mxu0 0.0
    %66 = vmatprep.subr.mxu0 0.0
    %67 = vmatpush1.msra.mxu0 0.0
    %68 = vmatprep.subr.mxu0 0.0
    %69 = vmatpush1.msra.mxu0 0.0
    %70 = vmatprep.subr.mxu0 0.0
    %71 = vmatpush1.msra.mxu0 0.0
    %72 = vmatprep.subr.mxu0 0.0
    %73 = vmatpush1.msra.mxu0 0.0
    %74 = vmatprep.subr.mxu0 0.0
    %75 = vmatpush1.msra.mxu0 0.0
    %76 = vmatprep.subr.mxu0 0.0
    %77 = vmatpush1.msra.mxu0 0.0
    %78 = vmatprep.subr.mxu0 0.0
    %79 = vmatpush1.msra.mxu0 0.0
    %80 = vmatprep.subr.mxu0 0.0
    %81 = vmatpush1.msra.mxu0 0.0
    %82 = vmatprep.subr.mxu0 0.0
    %83 = vmatpush1.msra.mxu0 0.0
    %84 = vmatprep.subr.mxu0 0.0
    %85 = vmatpush1.msra.mxu0 0.0
    %86 = vmatprep.subr.mxu0 0.0
    %87 = vmatpush1.msra.mxu0 0.0
    %88 = vmatprep.subr.mxu0 0.0
    %89 = vmatpush1.msra.mxu0 0.0
    %90 = vmatprep.subr.mxu0 0.0
    %91 = vmatpush1.msra.mxu0 0.0
    %92 = vmatprep.subr.mxu0 0.0
    %93 = vmatpush1.msra.mxu0 0.0
    %94 = vmatprep.subr.mxu0 0.0
    %95 = vmatpush1.msra.mxu0 0.0
    %96 = vmatprep.subr.mxu0 0.0
    %97 = vmatpush1.msra.mxu0 0.0
    %98 = vmatprep.subr.mxu0 0.0
    %99 = vmatpush1.msra.mxu0 0.0
    %100 = vmatprep.subr.mxu0 0.0
    %101 = vmatpush1.msra.mxu0 0.0
    %102 = vmatprep.subr.mxu0 0.0
    %103 = vmatpush1.msra.mxu0 0.0
    %104 = vmatprep.subr.mxu0 0.0
    %105 = vmatpush1.msra.mxu0 0.0
    %106 = vmatprep.subr.mxu0 0.0
    %107 = vmatpush1.msra.mxu0 0.0
    %108 = vmatprep.mubr.f32.mxu0 0.0
    %109 = vmatmul.mubr.f32.gmra.mrb[0].mxu0 %v42
    %v110 = vpop.f32.mrb[0].mxu0
    %v111 = vadd.f32 %v38, %v110
    %v112 = vpop.f32.mrb[0].mxu0
    %113 = vdwg.mxu0
    %v114 = vmax.f32 %v111, 0.0
    %v115 = vld [vmem:[%s3] sm:$0xff]
    %v116 = vld [vmem:[%s3 + $0x8] sm:$0xff]
    %v117 = vld [vmem:[%s3 + $0x10] sm:$0xff]
    %v118 = vld [vmem:[%s3 + $0x18] sm:$0xff]
    %v119 = vld [vmem:[%s4] sm:$0x1]
    %v121 = vlaneseq
    %v122 = vshrl.u32 %v121, 7
    %v123 = vsub.s32 0, %v122
    %v124 = vrot.slane %v119, %v123
    %v127 = vsel %vm40, %v114, 0
    %129 = vmatprep.subr.mxu0 0.0
    %130 = vmatpush1.msra.mxu0 %v115
    %131 = vmatprep.subr.mxu0 0.0
    %132 = vmatpush1.msra.mxu0 %v116
    %133 = vmatprep.subr.mxu0 0.0
    %134 = vmatpush1.msra.mxu0 %v117
    %135 = vmatprep.subr.mxu0 0.0
    %136 = vmatpush1.msra.mxu0 %v118
    %137 = vmatprep.subr.mxu0 0.0
    %138 = vmatpush1.msra.mxu0 0.0
    %139 = vmatprep.subr.mxu0 0.0
    %140 = vmatpush1.msra.mxu0 0.0
    %141 = vmatprep.subr.mxu0 0.0
    %142 = vmatpush1.msra.mxu0 0.0
    %143 = vmatprep.subr.mxu0 0.0
    %144 = vmatpush1.msra.mxu0 0.0
    %145 = vmatprep.subr.mxu0 0.0
    %146 = vmatpush1.msra.mxu0 0.0
    %147 = vmatprep.subr.mxu0 0.0
    %148 = vmatpush1.msra.mxu0 0.0
    %149 = vmatprep.subr.mxu0 0.0
    %150 = vmatpush1.msra.mxu0 0.0
    %151 = vmatprep.subr.mxu0 0.0
    %152 = vmatpush1.msra.mxu0 0.0
    %153 = vmatprep.subr.mxu0 0.0
    %154 = vmatpush1.msra.mxu0 0.0
    %155 = vmatprep.subr.mxu0 0.0
    %156 = vmatpush1.msra.mxu0 0.0
    %157 = vmatprep.subr.mxu0 0.0
    %158 = vmatpush1.msra.mxu0 0.0
    %159 = vmatprep.subr.mxu0 0.0
    %160 = vmatpush1.msra.mxu0 0.0
    %161 = vmatprep.subr.mxu0 0.0
    %162 = vmatpush1.msra.mxu0 0.0
    %163 = vmatprep.subr.mxu0 0.0
    %164 = vmatpush1.msra.mxu0 0.0
    %165 = vmatprep.subr.mxu0 0.0
    %166 = vmatpush1.msra.mxu0 0.0
    %167 = vmatprep.subr.mxu0 0.0
    %168 = vmatpush1.msra.mxu0 0.0
    %169 = vmatprep.subr.mxu0 0.0
    %170 = vmatpush1.msra.mxu0 0.0
    %171 = vmatprep.subr.mxu0 0.0
    %172 = vmatpush1.msra.mxu0 0.0
    %173 = vmatprep.subr.mxu0 0.0
    %174 = vmatpush1.msra.mxu0 0.0
    %175 = vmatprep.subr.mxu0 0.0
    %176 = vmatpush1.msra.mxu0 0.0
    %177 = vmatprep.subr.mxu0 0.0
    %178 = vmatpush1.msra.mxu0 0.0
    %179 = vmatprep.subr.mxu0 0.0
    %180 = vmatpush1.msra.mxu0 0.0
    %181 = vmatprep.subr.mxu0 0.0
    %182 = vmatpush1.msra.mxu0 0.0
    %183 = vmatprep.subr.mxu0 0.0
    %184 = vmatpush1.msra.mxu0 0.0
    %185 = vmatprep.subr.mxu0 0.0
    %186 = vmatpush1.msra.mxu0 0.0
    %187 = vmatprep.subr.mxu0 0.0
    %188 = vmatpush1.msra.mxu0 0.0
    %189 = vmatprep.subr.mxu0 0.0
    %190 = vmatpush1.msra.mxu0 0.0
    %191 = vmatprep.subr.mxu0 0.0
    %192 = vmatpush1.msra.mxu0 0.0
    %193 = vmatprep.mubr.f32.mxu0 0.0
    %194 = vmatmul.mubr.f32.gmra.mrb[0].mxu0 %v127
    %v195 = vpop.f32.mrb[0].mxu0
    %v196 = vadd.f32 %v124, %v195
    %v197 = vpop.f32.mrb[0].mxu0
    %198 = vdwg.mxu0
    %v199 = vmax.f32 %v196, 0.0
    %v200 = vld [vmem:[%s5] sm:$0x1]
    %s201 = sld [smem:[#allocation2]]
    %v202 = vstv %s201
    %vm203 = vcmask 130048
    %v205 = vsel %vm203, %v200, 0
    %v208 = vsel %vm203, %v199, 0
    %210 = vmatprep.subr.mxu0 0.0
    %211 = vmatpush1.xpose.msra.mxu0 %v208
    %212 = vmatprep.subr.mxu0 0.0
    %213 = vmatpush1.xpose.msra.mxu0 0.0
    %214 = vmatprep.subr.mxu0 0.0
    %215 = vmatpush1.xpose.msra.mxu0 0.0
    %216 = vmatprep.subr.mxu0 0.0
    %217 = vmatpush1.xpose.msra.mxu0 0.0
    %218 = vmatprep.subr.mxu0 0.0
    %219 = vmatpush1.xpose.msra.mxu0 0.0
    %220 = vmatprep.subr.mxu0 0.0
    %221 = vmatpush1.xpose.msra.mxu0 0.0
    %222 = vmatprep.subr.mxu0 0.0
    %223 = vmatpush1.xpose.msra.mxu0 0.0
    %224 = vmatprep.subr.mxu0 0.0
    %225 = vmatpush1.xpose.msra.mxu0 0.0
    %226 = vmatprep.subr.mxu0 0.0
    %227 = vmatpush1.xpose.msra.mxu0 0.0
    %228 = vmatprep.subr.mxu0 0.0
    %229 = vmatpush1.xpose.msra.mxu0 0.0
    %230 = vmatprep.subr.mxu0 0.0
    %231 = vmatpush1.xpose.msra.mxu0 0.0
    %232 = vmatprep.subr.mxu0 0.0
    %233 = vmatpush1.xpose.msra.mxu0 0.0
    %234 = vmatprep.subr.mxu0 0.0
    %235 = vmatpush1.xpose.msra.mxu0 0.0
    %236 = vmatprep.subr.mxu0 0.0
    %237 = vmatpush1.xpose.msra.mxu0 0.0
    %238 = vmatprep.subr.mxu0 0.0
    %239 = vmatpush1.xpose.msra.mxu0 0.0
    %240 = vmatprep.subr.mxu0 0.0
    %241 = vmatpush1.xpose.msra.mxu0 0.0
    %242 = vmatprep.subr.mxu0 0.0
    %243 = vmatpush1.xpose.msra.mxu0 0.0
    %244 = vmatprep.subr.mxu0 0.0
    %245 = vmatpush1.xpose.msra.mxu0 0.0
    %246 = vmatprep.subr.mxu0 0.0
    %247 = vmatpush1.xpose.msra.mxu0 0.0
    %248 = vmatprep.subr.mxu0 0.0
    %249 = vmatpush1.xpose.msra.mxu0 0.0
    %250 = vmatprep.subr.mxu0 0.0
    %251 = vmatpush1.xpose.msra.mxu0 0.0
    %252 = vmatprep.subr.mxu0 0.0
    %253 = vmatpush1.xpose.msra.mxu0 0.0
    %254 = vmatprep.subr.mxu0 0.0
    %255 = vmatpush1.xpose.msra.mxu0 0.0
    %256 = vmatprep.subr.mxu0 0.0
    %257 = vmatpush1.xpose.msra.mxu0 0.0
    %258 = vmatprep.subr.mxu0 0.0
    %259 = vmatpush1.xpose.msra.mxu0 0.0
    %260 = vmatprep.subr.mxu0 0.0
    %261 = vmatpush1.xpose.msra.mxu0 0.0
    %262 = vmatprep.subr.mxu0 0.0
    %263 = vmatpush1.xpose.msra.mxu0 0.0
    %264 = vmatprep.subr.mxu0 0.0
    %265 = vmatpush1.xpose.msra.mxu0 0.0
    %266 = vmatprep.subr.mxu0 0.0
    %267 = vmatpush1.xpose.msra.mxu0 0.0
    %268 = vmatprep.subr.mxu0 0.0
    %269 = vmatpush1.xpose.msra.mxu0 0.0
    %270 = vmatprep.subr.mxu0 0.0
    %271 = vmatpush1.xpose.msra.mxu0 0.0
    %272 = vmatprep.subr.mxu0 0.0
    %273 = vmatpush1.xpose.msra.mxu0 0.0
    %274 = vmatprep.mubr.f32.mxu0 0.0
    %275 = vmatmul.mubr.f32.gmra.mrb[0].mxu0 %v205
    %v276 = vpop.f32.mrb[0].mxu0
    %v277 = vadd.f32 %v202, %v276
    %v278 = vpop.f32.mrb[0].mxu0
    %279 = vdwg.mxu0
    %v280 = vxor.u32 %v277, 2147483648
    %v281 = vmul.f32 %v280, 1.442695
    %v282 = vpow.pop %v281
    %v283 = vadd.f32 %v282, 1.0
    %v284 = vrcp.pop %v283
    %v285 = vmul.f32 1.0, %v284
    %vm286 = vcmask 57344
    %287 = vst.msk [vmem:[#allocation3] sm:$0x1] %vm286, %v285
    // Predicated region
    $region30: #{tpu_custom_call.1} parent=1 // pred_check
      _
    $region31: #{tpu_custom_call.1} parent=1 // pred_check_branch
      %289 = sbr.rel (0) target = $region33
    $region32: #{tpu_custom_call.1} parent=1 // pred_region
      %s291 = ssub.s32 16, 16
      %292 = vsyncadd [#allocation4], %s291
      %s294 = sshll.u32 [#allocation3], 4
      %s295 = int_to_ptr.vmem [resolvable:$true] %s294
      %297 = dma.vmem_to_hbm [thread:$0]  %s295, 16, %s7, [#allocation4]
    $region33: #{tpu_custom_call.1} parent=1 // pred_fallthru
      _
    // Predicated region
    $region34: #{tpu_custom_call.1} parent=1 // pred_check
      _
    $region35: #{tpu_custom_call.1} parent=1 // pred_check_branch
      %299 = sbr.rel (0) target = $region37
    $region36: #{tpu_custom_call.1} parent=1 // pred_region
      %300 = dma.done [#allocation4], 16
    $region37: #{tpu_custom_call.1} parent=1 // pred_fallthru
      _
    %301 = vsyncpa [#allocation4], 1

</llo_original>
